<compile_context>
chip_gen: v7x
topology: tpu7x:2x2x1
jax: 0.10.0
libtpu: 0.0.40
codegen_flags: <defaults>
</compile_context>

<pallas_src>
import functools

import jax
import jax.numpy as jnp
import numpy as np
from jax import lax
from jax.experimental import pallas as pl
from jax.experimental.pallas import tpu as pltpu


def _round_up(x, m):
    return ((x + m - 1) // m) * m


def _oim_loss_kernel(x_ref, lutT_ref, tgt_ref, valid_ref,
                     logits_ref, nll_ref,
                     m_acc, l_acc, t_acc,
                     *, c_tile, c_total, mask_cols):
    # x_ref:      [TB, F]   bf16/f32  (scalar pre-folded; block revisited over kc)
    # lutT_ref:   [F, TC]   bf16/f32  (pre-transposed LUT tile, streamed over C)
    # tgt_ref:    [TB, 1]   i32       (global class index per row)
    # valid_ref:  [TB, 1]   f32       (1.0 for real rows, 0.0 for batch padding)
    # logits_ref: [TB, TC]  f32/bf16  (lane-dense output tile)
    # nll_ref:    [TB, 1]   f32       (per-example NLL, written at last C step)
    # m_acc/l_acc/t_acc: [TB, 1] f32 VMEM scratch (online LSE + target logit)
    kc = pl.program_id(1)
    nc = pl.num_programs(1)

    @pl.when(kc == 0)
    def _init():
        m_acc[...] = jnp.full_like(m_acc, -jnp.inf)
        l_acc[...] = jnp.zeros_like(l_acc)
        t_acc[...] = jnp.zeros_like(t_acc)

    # bf16 (or f32) operands, f32 MXU accumulation. `scalar` was folded into x
    # in the wrapper, so there is no per-step VPU scaling here.
    logits = jnp.dot(x_ref[...], lutT_ref[...],
                     preferred_element_type=jnp.float32)            # [TB, TC] f32

    # Lane-dense store of this logits tile (TC is a multiple of 128 lanes).
    logits_ref[...] = logits.astype(logits_ref.dtype)

    # Global class index of each column in this tile.
    col = lax.broadcasted_iota(jnp.int32, logits.shape, 1) + kc * c_tile

    def accumulate(lse_logits):
        # Online (streaming) log-sum-exp across C tiles.
        m_prev = m_acc[...]
        m_new = jnp.maximum(m_prev, jnp.max(lse_logits, axis=-1, keepdims=True))
        alpha = jnp.exp(m_prev - m_new)
        l_acc[...] = alpha * l_acc[...] + jnp.sum(jnp.exp(lse_logits - m_new),
                                                  axis=-1, keepdims=True)
        m_acc[...] = m_new

    if mask_cols:
        # Only the last C tile can contain padded class columns; mask only
        # there and keep every other step mask-free (pure VPU filler removed).
        @pl.when(kc == nc - 1)
        def _acc_masked():
            accumulate(jnp.where(col < c_total, logits, -jnp.inf))

        @pl.when(kc != nc - 1)
        def _acc_full():
            accumulate(logits)
    else:
        accumulate(logits)

    # Target-logit extraction fused into the same tile pass. Padded columns
    # never match a real target (< c_total), so no masking is needed here.
    hit = col == tgt_ref[...]                                        # [TB, TC]
    t_acc[...] += jnp.sum(jnp.where(hit, logits, 0.0), axis=-1, keepdims=True)

    @pl.when(kc == nc - 1)
    def _finalize():
        lse = m_acc[...] + jnp.log(l_acc[...])
        # Zero out padded batch rows so the wrapper mean over B is exact.
        nll_ref[...] = (lse - t_acc[...]) * valid_ref[...]


def oim_loss(inputs, lut, targets, scalar=1.0, *,
             use_bf16=True, c_tile=512, b_tile=None, lut_buffers=2,
             logits_dtype=jnp.float32):
    """Pallas implementation of OIMLoss.forward (weight=None).

    Returns (loss, logits), matching the PyTorch module:
      logits = (inputs @ lut.T) * scalar
      loss   = cross_entropy(logits, targets, reduction='mean')

    use_bf16=True streams x / LUT in bf16 (f32 MXU accumulation, f32 softmax);
    set use_bf16=False for bit-tight parity with the f32 reference.
    """
    B, F = inputs.shape
    C, F2 = lut.shape
    assert F == F2

    in_dtype = jnp.bfloat16 if use_bf16 else jnp.float32
    in_dsize = 2 if use_bf16 else 4
    out_dsize = jnp.dtype(logits_dtype).itemsize

    # --- tile selection -----------------------------------------------------
    if b_tile is not None:
        tb = _round_up(min(b_tile, _round_up(B, 8)), 8)
    elif B >= 256:
        tb = 256                       # fills the 256-wide MXU on v6e/v7x
    elif B >= 128:
        tb = 128                       # multiple of 128 for the v5e MXU
    else:
        tb = _round_up(B, 8)           # small-batch case (sublane multiple)
    b_pad = _round_up(B, tb)

    tc = _round_up(min(c_tile, _round_up(C, 128)), 128)   # lane multiple of 128
    c_pad = _round_up(C, tc)
    nb, nc = b_pad // tb, c_pad // tc

    # --- padding / casting (scalar folded in here, once) ---------------------
    x = (inputs.astype(jnp.float32) * jnp.float32(scalar)).astype(in_dtype)
    x_p = jnp.zeros((b_pad, F), in_dtype).at[:B].set(x)
    # Pre-transposed LUT [F, C_pad]: the MXU contracts the last axis of x
    # directly; padded classes are zero columns (masked only on the last tile).
    lutT_p = jnp.zeros((F, c_pad), in_dtype).at[:, :C].set(
        lut.astype(jnp.float32).T.astype(in_dtype))
    tgt_p = jnp.zeros((b_pad, 1), jnp.int32).at[:B, 0].set(targets.astype(jnp.int32))
    valid_p = jnp.zeros((b_pad, 1), jnp.float32).at[:B, 0].set(1.0)

    kernel = functools.partial(
        _oim_loss_kernel, c_tile=tc, c_total=C, mask_cols=(c_pad != C))

    lut_index = lambda bi, kc: (0, kc)
    if lut_buffers != 2:
        # Deeper LUT pipelining for small F (short per-step MXU time may not
        # cover the LUT tile DMA latency). Costs one extra F*tc tile of VMEM,
        # so keep the default 2 when VMEM is tight (v7x: 64 MiB physical).
        lut_spec = pl.BlockSpec((F, tc), lut_index,
                                pipeline_mode=pl.Buffered(lut_buffers))
    else:
        lut_spec = pl.BlockSpec((F, tc), lut_index)

    grid_spec = pltpu.PrefetchScalarGridSpec(
        num_scalar_prefetch=0,
        grid=(nb, nc),                       # reduction axis (C) last
        in_specs=[
            pl.BlockSpec((tb, F), lambda bi, kc: (bi, 0)),    # x (revisited over kc)
            lut_spec,                                         # lutT streamed over C
            pl.BlockSpec((tb, 1), lambda bi, kc: (bi, 0)),    # targets
            pl.BlockSpec((tb, 1), lambda bi, kc: (bi, 0)),    # row-valid mask
        ],
        out_specs=(
            pl.BlockSpec((tb, tc), lambda bi, kc: (bi, kc)),  # logits (lane-dense)
            pl.BlockSpec((tb, 1), lambda bi, kc: (bi, 0)),    # per-example NLL
        ),
        scratch_shapes=[
            pltpu.VMEM((tb, 1), jnp.float32),   # running max m
            pltpu.VMEM((tb, 1), jnp.float32),   # running sum l
            pltpu.VMEM((tb, 1), jnp.float32),   # target logit
        ],
    )

    # --- explicit VMEM budget (v5e default scoped = 16 MiB; v7x physical = 64 MiB)
    f_lanes = _round_up(F, 128)
    vmem_bytes = (max(2, lut_buffers) * F * tc * in_dsize      # lutT buffers
                  + 2 * tb * f_lanes * in_dsize                # x block
                  + 2 * tb * tc * out_dsize                    # logits out tiles
                  + 8 * tb * 128 * 4)                          # [tb,1] blocks + scratch (lane-padded)
    vmem_limit = int(min(max(2 * vmem_bytes + (1 << 20), 32 << 20), 64 << 20))

    # Advisory cost hint for XLA scheduling around this long custom call.
    cost = pl.CostEstimate(
        flops=int(2 * b_pad * c_pad * F),
        transcendentals=int(b_pad * c_pad + 2 * b_pad),
        bytes_accessed=int(nb * F * c_pad * in_dsize           # LUT re-streamed per batch tile
                           + b_pad * F * in_dsize              # x
                           + b_pad * c_pad * out_dsize         # logits writeback
                           + b_pad * 16))                      # targets / valid / nll

    logits_p, nll_p = pl.pallas_call(
        kernel,
        out_shape=(
            jax.ShapeDtypeStruct((b_pad, c_pad), logits_dtype),
            jax.ShapeDtypeStruct((b_pad, 1), jnp.float32),
        ),
        grid_spec=grid_spec,
        compiler_params=pltpu.CompilerParams(
            dimension_semantics=("parallel", "arbitrary"),
            vmem_limit_bytes=vmem_limit),
        cost_estimate=cost,
    )(x_p, lutT_p, tgt_p, valid_p)

    loss = jnp.sum(nll_p) / B
    return loss, logits_p[:B, :C]


def _reference(inputs, lut, targets, scalar):
    logits = (inputs @ lut.T) * scalar
    logp = jax.nn.log_softmax(logits, axis=-1)
    nll = -jnp.take_along_axis(logp, targets[:, None], axis=-1)[:, 0]
    return jnp.mean(nll), logits


if __name__ == "__main__":
    key = jax.random.PRNGKey(0)

    # Case 1: module-consistent toy shapes (single C tile, padded to 128 lanes).
    # Case 2: multi C tile (forces online LSE + last-tile-only column masking)
    #         with a non-multiple-of-8 batch (row masking).
    # Case 3: multi batch tile (exercises the "parallel" batch axis) on top of
    #         the multi C tile path.
    cases = [
        (8, 32, 16, 10.0, {}),
        (10, 64, 300, 5.0, {"c_tile": 128}),
        (20, 64, 300, 5.0, {"c_tile": 128, "b_tile": 8}),
    ]
    for (B, NUM_FEATURES, NUM_CLASSES, SCALAR, kw) in cases:
        key, k_x, k_lut, k_t = jax.random.split(key, 4)
        inputs = jax.random.normal(k_x, (B, NUM_FEATURES), dtype=jnp.float32)
        # Deterministic LUT init: row-normalized random vectors (OIM steady state).
        lut = jax.random.normal(k_lut, (NUM_CLASSES, NUM_FEATURES), dtype=jnp.float32)
        lut = lut / jnp.linalg.norm(lut, axis=-1, keepdims=True)
        targets = jax.random.randint(k_t, (B,), 0, NUM_CLASSES, dtype=jnp.int32)

        ref_loss, ref_logits = _reference(inputs, lut, targets, SCALAR)

        # Default bf16-streaming path: loose tolerance vs the f32 reference.
        loss, logits = oim_loss(inputs, lut, targets, scalar=SCALAR, **kw)
        jax.block_until_ready((loss, logits))
        np.testing.assert_allclose(np.asarray(logits), np.asarray(ref_logits),
                                   rtol=2e-2, atol=2.5e-1)
        np.testing.assert_allclose(np.asarray(loss), np.asarray(ref_loss),
                                   rtol=2e-2, atol=2.5e-1)

        # f32 parity path: tight tolerance against the reference.
        loss32, logits32 = oim_loss(inputs, lut, targets, scalar=SCALAR,
                                    use_bf16=False, **kw)
        jax.block_until_ready((loss32, logits32))
        np.testing.assert_allclose(np.asarray(logits32), np.asarray(ref_logits),
                                   rtol=1e-4, atol=1e-4)
        np.testing.assert_allclose(np.asarray(loss32), np.asarray(ref_loss),
                                   rtol=1e-4, atol=1e-4)

    # Demonstrate the optional bf16 logits writeback (halves B*C HBM traffic).
    B, NUM_FEATURES, NUM_CLASSES, SCALAR = cases[0][:4]
    key, k_x, k_lut, k_t = jax.random.split(key, 4)
    inputs = jax.random.normal(k_x, (B, NUM_FEATURES), dtype=jnp.float32)
    lut = jax.random.normal(k_lut, (NUM_CLASSES, NUM_FEATURES), dtype=jnp.float32)
    lut = lut / jnp.linalg.norm(lut, axis=-1, keepdims=True)
    targets = jax.random.randint(k_t, (B,), 0, NUM_CLASSES, dtype=jnp.int32)
    ref_loss, ref_logits = _reference(inputs, lut, targets, SCALAR)
    loss_b, logits_b = oim_loss(inputs, lut, targets, scalar=SCALAR,
                                logits_dtype=jnp.bfloat16)
    jax.block_until_ready((loss_b, logits_b))
    np.testing.assert_allclose(np.asarray(logits_b, dtype=np.float32),
                               np.asarray(ref_logits), rtol=2e-2, atol=2.5e-1)
    np.testing.assert_allclose(np.asarray(loss_b), np.asarray(ref_loss),
                               rtol=2e-2, atol=2.5e-1)

    print("KERNEL_OK")
</pallas_src>

<mosaic_0001>
module attributes {stable_mosaic.version = 11 : i64} {
  func.func @_oim_loss_kernel(%arg0: i32, %arg1: i32, %arg2: memref<8x32xbf16, #tpu.memory_space<vmem>>, %arg3: memref<32x128xbf16, #tpu.memory_space<vmem>>, %arg4: memref<8x1xi32, #tpu.memory_space<vmem>>, %arg5: memref<8x1xf32, #tpu.memory_space<vmem>>, %arg6: memref<8x128xf32, #tpu.memory_space<vmem>>, %arg7: memref<8x1xf32, #tpu.memory_space<vmem>>, %arg8: memref<8x1xf32, #tpu.memory_space<vmem>>, %arg9: memref<8x1xf32, #tpu.memory_space<vmem>>, %arg10: memref<8x1xf32, #tpu.memory_space<vmem>>) attributes {dimension_semantics = [#tpu.dimension_semantics<parallel>, #tpu.dimension_semantics<arbitrary>], iteration_bounds = array<i64: 1, 1>, scalar_prefetch = 0 : i64, scratch_operands = 3 : i64, tpu.core_type = #tpu.core_type<tc>, window_params = [{transform_indices = @transform_0, window_bounds = array<i64: 8, 32>}, {transform_indices = @transform_1, window_bounds = array<i64: 32, 128>}, {transform_indices = @transform_2, window_bounds = array<i64: 8, 1>}, {transform_indices = @transform_3, window_bounds = array<i64: 8, 1>}, {transform_indices = @transform_4, window_bounds = array<i64: 8, 128>}, {transform_indices = @transform_5, window_bounds = array<i64: 8, 1>}]} {
    %c0_i32 = arith.constant 0 : i32
    %0 = arith.cmpi eq, %arg1, %c0_i32 : i32
    %1 = arith.extui %0 : i1 to i32
    %c0_i32_0 = arith.constant 0 : i32
    %2 = arith.cmpi ne, %1, %c0_i32_0 : i32
    scf.if %2 {
      %cst_20 = arith.constant 0xFF800000 : f32
      %30 = vector.broadcast %cst_20 : f32 to vector<8x1xf32>
      %c0_21 = arith.constant 0 : index
      %c0_22 = arith.constant 0 : index
      %31 = vector.load %arg8[%c0_21, %c0_22] : memref<8x1xf32, #tpu.memory_space<vmem>>, vector<8x1xf32>
      tpu.vector_store %arg8[%c0_21, %c0_22], %30 {strides = array<i32>} : memref<8x1xf32, #tpu.memory_space<vmem>>, vector<8x1xf32>,
      %cst_23 = arith.constant 0.000000e+00 : f32
      %32 = vector.broadcast %cst_23 : f32 to vector<8x1xf32>
      %c0_24 = arith.constant 0 : index
      %c0_25 = arith.constant 0 : index
      %33 = vector.load %arg9[%c0_24, %c0_25] : memref<8x1xf32, #tpu.memory_space<vmem>>, vector<8x1xf32>
      tpu.vector_store %arg9[%c0_24, %c0_25], %32 {strides = array<i32>} : memref<8x1xf32, #tpu.memory_space<vmem>>, vector<8x1xf32>,
      %cst_26 = arith.constant 0.000000e+00 : f32
      %34 = vector.broadcast %cst_26 : f32 to vector<8x1xf32>
      %c0_27 = arith.constant 0 : index
      %c0_28 = arith.constant 0 : index
      %35 = vector.load %arg10[%c0_27, %c0_28] : memref<8x1xf32, #tpu.memory_space<vmem>>, vector<8x1xf32>
      tpu.vector_store %arg10[%c0_27, %c0_28], %34 {strides = array<i32>} : memref<8x1xf32, #tpu.memory_space<vmem>>, vector<8x1xf32>,
    } else {
    }
    %c0 = arith.constant 0 : index
    %c0_1 = arith.constant 0 : index
    %3 = vector.load %arg2[%c0, %c0_1] : memref<8x32xbf16, #tpu.memory_space<vmem>>, vector<8x32xbf16>
    %c0_2 = arith.constant 0 : index
    %c0_3 = arith.constant 0 : index
    %4 = vector.load %arg3[%c0_2, %c0_3] : memref<32x128xbf16, #tpu.memory_space<vmem>>, vector<32x128xbf16>
    %cst = arith.constant dense<0.000000e+00> : vector<8x128xf32>
    %5 = tpu.matmul %3, %4, %cst {dimension_numbers = #tpu.dot_dimension_numbers<[1], [0], [0], [1], [0, 0, 1, 1], [], []>} : vector<8x32xbf16>, vector<32x128xbf16>, vector<8x128xf32> -> vector<8x128xf32>
    %c0_4 = arith.constant 0 : index
    %c0_5 = arith.constant 0 : index
    %6 = vector.load %arg6[%c0_4, %c0_5] : memref<8x128xf32, #tpu.memory_space<vmem>>, vector<8x128xf32>
    tpu.vector_store %arg6[%c0_4, %c0_5], %5 {strides = array<i32>} : memref<8x128xf32, #tpu.memory_space<vmem>>, vector<8x128xf32>,
    %7 = tpu.iota {dimensions = array<i32: 1>} : vector<8x128xi32>
    %c128_i32 = arith.constant 128 : i32
    %8 = arith.muli %arg1, %c128_i32 : i32
    %9 = vector.broadcast %8 : i32 to vector<8x128xi32>
    %10 = arith.addi %7, %9 : vector<8x128xi32>
    %c0_i32_6 = arith.constant 0 : i32
    %11 = arith.cmpi eq, %arg1, %c0_i32_6 : i32
    %12 = arith.extui %11 : i1 to i32
    %c0_i32_7 = arith.constant 0 : i32
    %13 = arith.cmpi ne, %12, %c0_i32_7 : i32
    scf.if %13 {
      %c16_i32 = arith.constant 16 : i32
      %30 = vector.broadcast %c16_i32 : i32 to vector<8x128xi32>
      %31 = arith.cmpi slt, %10, %30 : vector<8x128xi32>
      %cst_20 = arith.constant 0xFF800000 : f32
      %32 = vector.broadcast %cst_20 : f32 to vector<8x128xf32>
      %33 = arith.select %31, %5, %32 : vector<8x128xi1>, vector<8x128xf32>
      %c0_21 = arith.constant 0 : index
      %c0_22 = arith.constant 0 : index
      %34 = vector.load %arg8[%c0_21, %c0_22] : memref<8x1xf32, #tpu.memory_space<vmem>>, vector<8x1xf32>
      %cst_23 = arith.constant dense<0xFF800000> : vector<8xf32>
      %35 = vector.multi_reduction <maximumf>, %33, %cst_23 [1] : vector<8x128xf32> to vector<8xf32>
      %36 = vector.shape_cast %35 : vector<8xf32> to vector<8x1xf32>
      %37 = arith.maximumf %34, %36 : vector<8x1xf32>
      %38 = arith.subf %34, %37 : vector<8x1xf32>
      %39 = math.exp %38 : vector<8x1xf32>
      %c0_24 = arith.constant 0 : index
      %c0_25 = arith.constant 0 : index
      %40 = vector.load %arg9[%c0_24, %c0_25] : memref<8x1xf32, #tpu.memory_space<vmem>>, vector<8x1xf32>
      %41 = arith.mulf %39, %40 : vector<8x1xf32>
      %42 = vector.broadcast %37 : vector<8x1xf32> to vector<8x128xf32>
      %43 = arith.subf %33, %42 : vector<8x128xf32>
      %44 = math.exp %43 : vector<8x128xf32>
      %cst_26 = arith.constant dense<0.000000e+00> : vector<8xf32>
      %45 = vector.multi_reduction <add>, %44, %cst_26 [1] : vector<8x128xf32> to vector<8xf32>
      %46 = vector.shape_cast %45 : vector<8xf32> to vector<8x1xf32>
      %47 = arith.addf %41, %46 : vector<8x1xf32>
      %c0_27 = arith.constant 0 : index
      %c0_28 = arith.constant 0 : index
      %48 = vector.load %arg9[%c0_27, %c0_28] : memref<8x1xf32, #tpu.memory_space<vmem>>, vector<8x1xf32>
      tpu.vector_store %arg9[%c0_27, %c0_28], %47 {strides = array<i32>} : memref<8x1xf32, #tpu.memory_space<vmem>>, vector<8x1xf32>,
      %c0_29 = arith.constant 0 : index
      %c0_30 = arith.constant 0 : index
      %49 = vector.load %arg8[%c0_29, %c0_30] : memref<8x1xf32, #tpu.memory_space<vmem>>, vector<8x1xf32>
      tpu.vector_store %arg8[%c0_29, %c0_30], %37 {strides = array<i32>} : memref<8x1xf32, #tpu.memory_space<vmem>>, vector<8x1xf32>,
    } else {
    }
    %c0_i32_8 = arith.constant 0 : i32
    %14 = arith.cmpi ne, %arg1, %c0_i32_8 : i32
    %15 = arith.extui %14 : i1 to i32
    %c0_i32_9 = arith.constant 0 : i32
    %16 = arith.cmpi ne, %15, %c0_i32_9 : i32
    scf.if %16 {
      %c0_20 = arith.constant 0 : index
      %c0_21 = arith.constant 0 : index
      %30 = vector.load %arg8[%c0_20, %c0_21] : memref<8x1xf32, #tpu.memory_space<vmem>>, vector<8x1xf32>
      %cst_22 = arith.constant dense<0xFF800000> : vector<8xf32>
      %31 = vector.multi_reduction <maximumf>, %5, %cst_22 [1] : vector<8x128xf32> to vector<8xf32>
      %32 = vector.shape_cast %31 : vector<8xf32> to vector<8x1xf32>
      %33 = arith.maximumf %30, %32 : vector<8x1xf32>
      %34 = arith.subf %30, %33 : vector<8x1xf32>
      %35 = math.exp %34 : vector<8x1xf32>
      %c0_23 = arith.constant 0 : index
      %c0_24 = arith.constant 0 : index
      %36 = vector.load %arg9[%c0_23, %c0_24] : memref<8x1xf32, #tpu.memory_space<vmem>>, vector<8x1xf32>
      %37 = arith.mulf %35, %36 : vector<8x1xf32>
      %38 = vector.broadcast %33 : vector<8x1xf32> to vector<8x128xf32>
      %39 = arith.subf %5, %38 : vector<8x128xf32>
      %40 = math.exp %39 : vector<8x128xf32>
      %cst_25 = arith.constant dense<0.000000e+00> : vector<8xf32>
      %41 = vector.multi_reduction <add>, %40, %cst_25 [1] : vector<8x128xf32> to vector<8xf32>
      %42 = vector.shape_cast %41 : vector<8xf32> to vector<8x1xf32>
      %43 = arith.addf %37, %42 : vector<8x1xf32>
      %c0_26 = arith.constant 0 : index
      %c0_27 = arith.constant 0 : index
      %44 = vector.load %arg9[%c0_26, %c0_27] : memref<8x1xf32, #tpu.memory_space<vmem>>, vector<8x1xf32>
      tpu.vector_store %arg9[%c0_26, %c0_27], %43 {strides = array<i32>} : memref<8x1xf32, #tpu.memory_space<vmem>>, vector<8x1xf32>,
      %c0_28 = arith.constant 0 : index
      %c0_29 = arith.constant 0 : index
      %45 = vector.load %arg8[%c0_28, %c0_29] : memref<8x1xf32, #tpu.memory_space<vmem>>, vector<8x1xf32>
      tpu.vector_store %arg8[%c0_28, %c0_29], %33 {strides = array<i32>} : memref<8x1xf32, #tpu.memory_space<vmem>>, vector<8x1xf32>,
    } else {
    }
    %c0_10 = arith.constant 0 : index
    %c0_11 = arith.constant 0 : index
    %17 = vector.load %arg4[%c0_10, %c0_11] : memref<8x1xi32, #tpu.memory_space<vmem>>, vector<8x1xi32>
    %18 = vector.broadcast %17 : vector<8x1xi32> to vector<8x128xi32>
    %19 = arith.cmpi eq, %10, %18 : vector<8x128xi32>
    %c0_12 = arith.constant 0 : index
    %c0_13 = arith.constant 0 : index
    %20 = vector.load %arg10[%c0_12, %c0_13] : memref<8x1xf32, #tpu.memory_space<vmem>>, vector<8x1xf32>
    %cst_14 = arith.constant 0.000000e+00 : f32
    %21 = vector.broadcast %cst_14 : f32 to vector<8x128xf32>
    %22 = arith.select %19, %5, %21 : vector<8x128xi1>, vector<8x128xf32>
    %cst_15 = arith.constant dense<0.000000e+00> : vector<8xf32>
    %23 = vector.multi_reduction <add>, %22, %cst_15 [1] : vector<8x128xf32> to vector<8xf32>
    %24 = vector.shape_cast %23 : vector<8xf32> to vector<8x1xf32>
    %25 = arith.addf %20, %24 : vector<8x1xf32>
    %c0_16 = arith.constant 0 : index
    %c0_17 = arith.constant 0 : index
    %26 = vector.load %arg10[%c0_16, %c0_17] : memref<8x1xf32, #tpu.memory_space<vmem>>, vector<8x1xf32>
    tpu.vector_store %arg10[%c0_16, %c0_17], %25 {strides = array<i32>} : memref<8x1xf32, #tpu.memory_space<vmem>>, vector<8x1xf32>,
    %c0_i32_18 = arith.constant 0 : i32
    %27 = arith.cmpi eq, %arg1, %c0_i32_18 : i32
    %28 = arith.extui %27 : i1 to i32
    %c0_i32_19 = arith.constant 0 : i32
    %29 = arith.cmpi ne, %28, %c0_i32_19 : i32
    scf.if %29 {
      %c0_20 = arith.constant 0 : index
      %c0_21 = arith.constant 0 : index
      %30 = vector.load %arg8[%c0_20, %c0_21] : memref<8x1xf32, #tpu.memory_space<vmem>>, vector<8x1xf32>
      %c0_22 = arith.constant 0 : index
      %c0_23 = arith.constant 0 : index
      %31 = vector.load %arg9[%c0_22, %c0_23] : memref<8x1xf32, #tpu.memory_space<vmem>>, vector<8x1xf32>
      %32 = math.log %31 : vector<8x1xf32>
      %33 = arith.addf %30, %32 : vector<8x1xf32>
      %c0_24 = arith.constant 0 : index
      %c0_25 = arith.constant 0 : index
      %34 = vector.load %arg10[%c0_24, %c0_25] : memref<8x1xf32, #tpu.memory_space<vmem>>, vector<8x1xf32>
      %35 = arith.subf %33, %34 : vector<8x1xf32>
      %c0_26 = arith.constant 0 : index
      %c0_27 = arith.constant 0 : index
      %36 = vector.load %arg5[%c0_26, %c0_27] : memref<8x1xf32, #tpu.memory_space<vmem>>, vector<8x1xf32>
      %37 = arith.mulf %35, %36 : vector<8x1xf32>
      %c0_28 = arith.constant 0 : index
      %c0_29 = arith.constant 0 : index
      %38 = vector.load %arg7[%c0_28, %c0_29] : memref<8x1xf32, #tpu.memory_space<vmem>>, vector<8x1xf32>
      tpu.vector_store %arg7[%c0_28, %c0_29], %37 {strides = array<i32>} : memref<8x1xf32, #tpu.memory_space<vmem>>, vector<8x1xf32>,
    } else {
    }
    return
  }
  func.func @transform_0(%arg0: i32, %arg1: i32) -> (i32, i32) {
    %c0_i32 = arith.constant 0 : i32
    %c0_i32_0 = arith.constant 0 : i32
    return %arg0, %c0_i32 : i32, i32
  }
  func.func @transform_1(%arg0: i32, %arg1: i32) -> (i32, i32) {
    %c0_i32 = arith.constant 0 : i32
    %c0_i32_0 = arith.constant 0 : i32
    return %c0_i32, %arg1 : i32, i32
  }
  func.func @transform_2(%arg0: i32, %arg1: i32) -> (i32, i32) {
    %c0_i32 = arith.constant 0 : i32
    %c0_i32_0 = arith.constant 0 : i32
    return %arg0, %c0_i32 : i32, i32
  }
  func.func @transform_3(%arg0: i32, %arg1: i32) -> (i32, i32) {
    %c0_i32 = arith.constant 0 : i32
    %c0_i32_0 = arith.constant 0 : i32
    return %arg0, %c0_i32 : i32, i32
  }
  func.func @transform_4(%arg0: i32, %arg1: i32) -> (i32, i32) {
    %c0_i32 = arith.constant 0 : i32
    return %arg0, %arg1 : i32, i32
  }
  func.func @transform_5(%arg0: i32, %arg1: i32) -> (i32, i32) {
    %c0_i32 = arith.constant 0 : i32
    %c0_i32_0 = arith.constant 0 : i32
    return %arg0, %c0_i32 : i32, i32
  }
}

</mosaic_0001>

<llo_original>
// kernel: tpu_custom_call.1
$region0: #{tpu_custom_call.1}
  #allocation0 [shape = 'u32[]', space=smem, size = 0x4, offset = 0x4, fixed_abs, tag = 'smem constant byte address 0x4 - core index']
  #allocation1 [shape = 'u32[144,128]{1,0:T(1,128)}', space=vmem, size = 0x12000, scoped, tag = 'internal scratch']
  #allocation2 [shape = 'f32[8,1]{1,0:T(8,128)}', space=vmem, size = 0x1000, scoped, tag = 'scratch operand']
  #allocation3 [shape = 'f32[8,1]{1,0:T(8,128)}', space=vmem, size = 0x1000, scoped, tag = 'scratch operand']
  #allocation4 [shape = 'f32[8,1]{1,0:T(8,128)}', space=vmem, size = 0x1000, scoped, tag = 'scratch operand']
  %s0 = inlined_call_operand.vmem [shape: bf16[8,32], index: 0, kind: input, shape index: {}]
  %s1 = inlined_call_operand.vmem [shape: bf16[32,128], index: 1, kind: input, shape index: {}]
  %s2 = inlined_call_operand.vmem [shape: s32[8,1], index: 2, kind: input, shape index: {}]
  %s3 = inlined_call_operand.vmem [shape: f32[8,1], index: 3, kind: input, shape index: {}]
  %s4 = inlined_call_operand.hbm [shape: f32[8,128], index: 4, kind: output, shape index: {0}]
  %s5 = inlined_call_operand.vmem [shape: f32[8,1], index: 5, kind: output, shape index: {1}]
  %6 = xla_tuple %s4, %s5
  %s7 = sld [smem:[#allocation0]]
  $region50: #{tpu_custom_call.1} parent=0
    _
  %s9 = ssub.s32 1, %s7
  %s10 = scalar_select 0, %s9, %s7
  $region1: #{tpu_custom_call.1} parent=0
    #allocation5 [shape = 'u8[4096]{0}', space=vmem, size = 0x1000, scoped, tag = 'output window, operand 0, single buffered']
    #allocation6 [shape = 's32[1]{0}', space=sflag, size = 0x4, scoped, tag = 'scoped memory for tpu_custom_call.1']
    %11 = vsyncpa [#allocation6], 0
    // Predicated region
    $region2: #{tpu_custom_call.1} parent=1 // pred_check
      _
    $region3: #{tpu_custom_call.1} parent=1 // pred_check_branch
      %13 = sbr.rel (0) target = $region5
    $region4: #{tpu_custom_call.1} parent=1 // pred_region
      _
    $region5: #{tpu_custom_call.1} parent=1 // pred_fallthru
      _
    // Predicated region
    $region6: #{tpu_custom_call.1} parent=1 // pred_check
      _
    $region7: #{tpu_custom_call.1} parent=1 // pred_check_branch
      %15 = sbr.rel (0) target = $region9
    $region8: #{tpu_custom_call.1} parent=1 // pred_region
      _
    $region9: #{tpu_custom_call.1} parent=1 // pred_fallthru
      _
    // Predicated region
    $region10: #{tpu_custom_call.1} parent=1 // pred_check
      _
    $region11: #{tpu_custom_call.1} parent=1 // pred_check_branch
      %17 = sbr.rel (0) target = $region13
    $region12: #{tpu_custom_call.1} parent=1 // pred_region
      _
    $region13: #{tpu_custom_call.1} parent=1 // pred_fallthru
      _
    // Predicated region
    $region14: #{tpu_custom_call.1} parent=1 // pred_check
      _
    $region15: #{tpu_custom_call.1} parent=1 // pred_check_branch
      %19 = sbr.rel (0) target = $region17
    $region16: #{tpu_custom_call.1} parent=1 // pred_region
      _
    $region17: #{tpu_custom_call.1} parent=1 // pred_fallthru
      _
    %p21 = scmp.eq.s32.totalorder 0, 0
    // Predicated region
    $region18: #{tpu_custom_call.1} parent=1 // pred_check
      %p22 = pneg %p21
    $region19: #{tpu_custom_call.1} parent=1 // pred_check_branch
      %24 = sbr.rel (%p22) target = $region21
    $region20: #{tpu_custom_call.1} parent=1 // pred_region
      %vm25 = vcmask 7168
      %26 = vst.msk [vmem:[#allocation2] sm:$0xff] %vm25, -inf
      %27 = vst.msk [vmem:[#allocation3] sm:$0xff] %vm25, 0.0
      %28 = vst.msk [vmem:[#allocation4] sm:$0xff] %vm25, 0.0
    $region21: #{tpu_custom_call.1} parent=1 // pred_fallthru
      _
    %v29 = vld [vmem:[%s0] sm:$0xf]
    %v30 = vld [vmem:[%s1] sm:$0xf]
    %v31 = vld [vmem:[%s1 + $0x4] sm:$0xf]
    %v32 = vld [vmem:[%s1 + $0x8] sm:$0xf]
    %v33 = vld [vmem:[%s1 + $0xc] sm:$0xf]
    %v38 = vunpack.c.l.b16 %v30
    %v39 = vunpack.c.l.b16 %v31
    %v40 = vunpack.c.l.b16 %v32
    %v41 = vunpack.c.l.b16 %v33
    %v42 = vpack.c.b16 %v39, %v38
    %v43 = vpack.c.b16 %v41, %v40
    %vm46 = vcmask 261120
    %v48 = vsel %vm46, %v29, 0
    %50 = vmatprep.subr.bf16.mxu0 0
    %51 = vmatpush1.bf16.msra.mxu0 %v42
    %52 = vmatprep.subr.bf16.mxu0 0
    %53 = vmatpush1.bf16.msra.mxu0 %v43
    %54 = vmatprep.subr.bf16.mxu0 0
    %55 = vmatpush1.bf16.msra.mxu0 0
    %56 = vmatprep.subr.bf16.mxu0 0
    %57 = vmatpush1.bf16.msra.mxu0 0
    %58 = vmatprep.subr.bf16.mxu0 0
    %59 = vmatpush1.bf16.msra.mxu0 0
    %60 = vmatprep.subr.bf16.mxu0 0
    %61 = vmatpush1.bf16.msra.mxu0 0
    %62 = vmatprep.subr.bf16.mxu0 0
    %63 = vmatpush1.bf16.msra.mxu0 0
    %64 = vmatprep.subr.bf16.mxu0 0
    %65 = vmatpush1.bf16.msra.mxu0 0
    %66 = vmatprep.subr.bf16.mxu0 0
    %67 = vmatpush1.bf16.msra.mxu0 0
    %68 = vmatprep.subr.bf16.mxu0 0
    %69 = vmatpush1.bf16.msra.mxu0 0
    %70 = vmatprep.subr.bf16.mxu0 0
    %71 = vmatpush1.bf16.msra.mxu0 0
    %72 = vmatprep.subr.bf16.mxu0 0
    %73 = vmatpush1.bf16.msra.mxu0 0
    %74 = vmatprep.subr.bf16.mxu0 0
    %75 = vmatpush1.bf16.msra.mxu0 0
    %76 = vmatprep.subr.bf16.mxu0 0
    %77 = vmatpush1.bf16.msra.mxu0 0
    %78 = vmatprep.subr.bf16.mxu0 0
    %79 = vmatpush1.bf16.msra.mxu0 0
    %80 = vmatprep.subr.bf16.mxu0 0
    %81 = vmatpush1.bf16.msra.mxu0 0
    %82 = vmatprep.mubr.bf16.mxu0 0
    %83 = vmatmul.mubr.bf16.gmra.mrb[0].mxu0 %v48
    %v84 = vpop.f32.mrb[0].mxu0
    %v85 = vadd.f32 0.0, %v84
    %v86 = vpop.f32.mrb[0].mxu0
    %v87 = vpop.f32.mrb[0].mxu0
    %v88 = vpop.f32.mrb[0].mxu0
    %89 = vdwg.mxu0
    %90 = vst [vmem:[#allocation5] sm:$0xff] %v85
    %v91 = vlaneseq
    %v92 = vand.u32 %v91, 127
    %s93 = smul.u32 0, 128
    %v94 = vstv %s93
    %v95 = vadd.s32 %v92, %v94
    // Predicated region
    $region22: #{tpu_custom_call.1} parent=1 // pred_check
      %p96 = pneg %p21
    $region23: #{tpu_custom_call.1} parent=1 // pred_check_branch
      %98 = sbr.rel (%p96) target = $region25
    $region24: #{tpu_custom_call.1} parent=1 // pred_region
      %vm99 = vcmp.lt.s32.totalorder %v95, 16
      %v100 = vsel %vm99, %v85, -inf
      %v101 = vld [vmem:[#allocation2] sm:$0xff]
      %102 = vmax.xlane.f32.xlu0 %v100
      %v103 = vpop.xlane.xlu0 %102
      %v104 = vmax.f32 %v101, %v103
      %v105 = vsub.f32 %v101, %v104
      %v106 = vmul.f32 %v105, 1.442695
      %v107 = vpow.pop %v106
      %v108 = vld [vmem:[#allocation3] sm:$0xff]
      %v109 = vmul.f32 %v107, %v108
      %111 = vset.pattern.permute.xlu0 0
      %112 = vperm.xlu0 %111, %v104
      %v113 = vpop.permute.xlu0 %112
      %v115 = vsub.f32 %v100, %v113
      %v116 = vmul.f32 %v115, 1.442695
      %v117 = vpow.pop %v116
      %118 = vadd.xlane.f32.xlu0 %v117
      %v119 = vpop.xlane.xlu0 %118
      %v120 = vadd.f32 %v109, %v119
      %vm121 = vcmask 7168
      %122 = vst.msk [vmem:[#allocation3] sm:$0xff] %vm121, %v120
      %123 = vst.msk [vmem:[#allocation2] sm:$0xff] %vm121, %v104
    $region25: #{tpu_custom_call.1} parent=1 // pred_fallthru
      _
    %p124 = scmp.ne.s32.totalorder 0, 0
    // Predicated region
    $region26: #{tpu_custom_call.1} parent=1 // pred_check
      %p125 = pneg %p124
    $region27: #{tpu_custom_call.1} parent=1 // pred_check_branch
      %127 = sbr.rel (%p125) target = $region29
    $region28: #{tpu_custom_call.1} parent=1 // pred_region
      %v128 = vld [vmem:[#allocation2] sm:$0xff]
      %129 = vmax.xlane.f32.xlu0 %v85
      %v130 = vpop.xlane.xlu0 %129
      %v131 = vmax.f32 %v128, %v130
      %v132 = vsub.f32 %v128, %v131
      %v133 = vmul.f32 %v132, 1.442695
      %v134 = vpow.pop %v133
      %v135 = vld [vmem:[#allocation3] sm:$0xff]
      %v136 = vmul.f32 %v134, %v135
      %138 = vset.pattern.permute.xlu0 0
      %139 = vperm.xlu0 %138, %v131
      %v140 = vpop.permute.xlu0 %139
      %v142 = vsub.f32 %v85, %v140
      %v143 = vmul.f32 %v142, 1.442695
      %v144 = vpow.pop %v143
      %145 = vadd.xlane.f32.xlu0 %v144
      %v146 = vpop.xlane.xlu0 %145
      %v147 = vadd.f32 %v136, %v146
      %vm148 = vcmask 7168
      %149 = vst.msk [vmem:[#allocation3] sm:$0xff] %vm148, %v147
      %150 = vst.msk [vmem:[#allocation2] sm:$0xff] %vm148, %v131
    $region29: #{tpu_custom_call.1} parent=1 // pred_fallthru
      _
    %v151 = vld [vmem:[%s2] sm:$0xff]
    %152 = vset.pattern.permute.xlu0 0
    %153 = vperm.xlu0 %152, %v151
    %v154 = vpop.permute.xlu0 %153
    %vm155 = vcmp.eq.s32.totalorder %v95, %v154
    %v156 = vld [vmem:[#allocation4] sm:$0xff]
    %v157 = vsel %vm155, %v85, 0.0
    %158 = vadd.xlane.f32.xlu0 %v157
    %v159 = vpop.xlane.xlu0 %158
    %v160 = vadd.f32 %v156, %v159
    %vm161 = vcmask 7168
    %162 = vst.msk [vmem:[#allocation4] sm:$0xff] %vm161, %v160
    // Predicated region
    $region30: #{tpu_custom_call.1} parent=1 // pred_check
      %p163 = pneg %p21
    $region31: #{tpu_custom_call.1} parent=1 // pred_check_branch
      %165 = sbr.rel (%p163) target = $region33
    $region32: #{tpu_custom_call.1} parent=1 // pred_region
      %v166 = vld [vmem:[#allocation2] sm:$0xff]
      %v167 = vld [vmem:[#allocation3] sm:$0xff]
      %v168 = vlog2.pop %v167
      %v169 = vmul.f32 %v168, 0.6931472
      %v170 = vadd.f32 %v166, %v169
      %v171 = vld [vmem:[#allocation4] sm:$0xff]
      %v172 = vsub.f32 %v170, %v171
      %v173 = vld [vmem:[%s3] sm:$0xff]
      %v174 = vmul.f32 %v172, %v173
      %175 = vst.msk [vmem:[%s5] sm:$0xff] %vm161, %v174
    $region33: #{tpu_custom_call.1} parent=1 // pred_fallthru
      _
    // Predicated region
    $region34: #{tpu_custom_call.1} parent=1 // pred_check
      _
    $region35: #{tpu_custom_call.1} parent=1 // pred_check_branch
      %177 = sbr.rel (0) target = $region37
    $region36: #{tpu_custom_call.1} parent=1 // pred_region
      %s179 = ssub.s32 128, 128
      %180 = vsyncadd [#allocation6], %s179
      %s182 = sshll.u32 [#allocation5], 4
      %s183 = int_to_ptr.vmem [resolvable:$true] %s182
      %185 = dma.vmem_to_hbm [thread:$0]  %s183, 128, %s4, [#allocation6]
    $region37: #{tpu_custom_call.1} parent=1 // pred_fallthru
      _
    // Predicated region
    $region38: #{tpu_custom_call.1} parent=1 // pred_check
      _
    $region39: #{tpu_custom_call.1} parent=1 // pred_check_branch
      %187 = sbr.rel (0) target = $region41
    $region40: #{tpu_custom_call.1} parent=1 // pred_region
      _
    $region41: #{tpu_custom_call.1} parent=1 // pred_fallthru
      _
    // Predicated region
    $region42: #{tpu_custom_call.1} parent=1 // pred_check
      _
    $region43: #{tpu_custom_call.1} parent=1 // pred_check_branch
      %189 = sbr.rel (0) target = $region45
    $region44: #{tpu_custom_call.1} parent=1 // pred_region
      %190 = dma.done [#allocation6], 128
    $region45: #{tpu_custom_call.1} parent=1 // pred_fallthru
      _
    // Predicated region
    $region46: #{tpu_custom_call.1} parent=1 // pred_check
      _
    $region47: #{tpu_custom_call.1} parent=1 // pred_check_branch
      %192 = sbr.rel (0) target = $region49
    $region48: #{tpu_custom_call.1} parent=1 // pred_region
      _
    $region49: #{tpu_custom_call.1} parent=1 // pred_fallthru
      _
    %193 = vsyncpa [#allocation6], 1

</llo_original>
